<compile_context>
chip_gen: v6e
topology: v6e:2x2x1
jax: 0.10.0
libtpu: 0.0.40
codegen_flags: <defaults>
</compile_context>

<pallas_src>
import functools

import jax
import jax.numpy as jnp
from jax import lax
from jax.experimental import pallas as pl
from jax.experimental.pallas import tpu as pltpu


# ----------------------------------------------------------------------------
# Small helpers
# ----------------------------------------------------------------------------
def _round_up(x, m):
    return ((x + m - 1) // m) * m


def _vmem_capacity_bytes():
    try:
        return int(pltpu.get_tpu_info().vmem_capacity_bytes)
    except Exception:
        return 64 * 1024 * 1024          # conservative (v7x-sized) fallback


def _is_multicore_chip():
    # v7x has 2 TensorCores per chip; make sure the "parallel" batch axis has
    # at least 2 grid steps there so both cores are used.
    try:
        return 'v7' in jax.devices()[0].device_kind.lower()
    except Exception:
        return False


def _pick_batch_block(batch, nvp, seq_len, d, d_ff, layer_weight_bytes,
                      vmem_budget, min_steps=1):
    """Largest divisor of `batch` whose per-step VMEM footprint fits the budget."""
    # f32 bytes per unit of bb: encoder in/out blocks (double buffered) + scratch
    per_bb = nvp * d * 4 * (2 + 2 + 1)
    # largest in-kernel temporaries (fused QKV / FFN intermediate, x2 headroom)
    per_bb += nvp * max(3 * d, d_ff) * 4 * 2
    # embed kernel's (nvp, L) input block (double buffered)
    per_bb += nvp * seq_len * 4 * 2
    fixed = 2 * layer_weight_bytes                 # double-buffered streamed weights
    avail = max(vmem_budget - fixed, per_bb)
    cap = max(1, min(batch, avail // per_bb))
    if min_steps > 1 and batch >= min_steps:
        cap = min(cap, batch // min_steps)
    cap = int(cap)
    for bbv in range(cap, 0, -1):
        if batch % bbv == 0:
            return bbv
    return 1


def _layernorm(x, g, b, eps=1e-5):
    mu = jnp.mean(x, axis=-1, keepdims=True)
    xc = x - mu
    var = jnp.mean(xc * xc, axis=-1, keepdims=True)
    return xc * lax.rsqrt(var + eps) * g + b


# ----------------------------------------------------------------------------
# Kernel 1: fused RevIN stats + inverted embedding.
# Input is already in token layout (bb, Nv_pad, L): rows [0, N) are variates
# (normalized), [N, Nv) are time-mark features (raw), [Nv, Nv_pad) are zero pad.
# One batched (bb*Nv_pad, L) x (L, D) bf16 matmul produces the tokens.
# ----------------------------------------------------------------------------
def _embed_kernel(n_feat, x_ref, w_ref, b_ref, o_ref, mean_ref, std_ref):
    n = n_feat
    x = x_ref[...].astype(jnp.float32)                 # (bb, Nv_pad, L)
    bb, nvp, seq_len = x.shape
    mean = jnp.mean(x, axis=2, keepdims=True)          # (bb, Nv_pad, 1)
    xc = x - mean
    var = jnp.mean(xc * xc, axis=2, keepdims=True)     # biased (unbiased=False)
    rstd = lax.rsqrt(var + 1e-5)
    row = lax.broadcasted_iota(jnp.int32, (1, nvp, 1), 1)
    xn = jnp.where(row < n, xc * rstd, x)              # normalize variates only

    cdt = w_ref.dtype                                  # bf16 MXU operand dtype
    tok = xn.reshape(bb * nvp, seq_len)
    emb = jnp.dot(tok.astype(cdt), w_ref[...],
                  preferred_element_type=jnp.float32) + b_ref[...]
    o_ref[...] = emb.reshape(bb, nvp, -1).astype(o_ref.dtype)
    mean_ref[...] = mean
    std_ref[...] = jnp.sqrt(var + 1e-5)


def embed(x_tok, w, b, n_feat, bb, vmem_limit):
    B, nvp, L = x_tok.shape
    D = w.shape[1]
    return pl.pallas_call(
        functools.partial(_embed_kernel, n_feat),
        out_shape=(jax.ShapeDtypeStruct((B, nvp, D), jnp.float32),
                   jax.ShapeDtypeStruct((B, nvp, 1), jnp.float32),
                   jax.ShapeDtypeStruct((B, nvp, 1), jnp.float32)),
        grid=(B // bb,),
        in_specs=[pl.BlockSpec((bb, nvp, L), lambda i: (i, 0, 0)),
                  pl.BlockSpec((L, D), lambda i: (0, 0)),
                  pl.BlockSpec((1, D), lambda i: (0, 0))],
        out_specs=(pl.BlockSpec((bb, nvp, D), lambda i: (i, 0, 0)),
                   pl.BlockSpec((bb, nvp, 1), lambda i: (i, 0, 0)),
                   pl.BlockSpec((bb, nvp, 1), lambda i: (i, 0, 0))),
        compiler_params=pltpu.CompilerParams(
            dimension_semantics=("parallel",), vmem_limit_bytes=vmem_limit),
    )(x_tok, w, b)


# ----------------------------------------------------------------------------
# Kernel 2: full encoder stack.  grid = (batch_blocks, e_layers); the activation
# lives in a VMEM scratch across the layer axis while per-layer bf16 weights are
# streamed via the layer grid axis.  MHA (fused QKV / fused Wo) + residual + LN
# + FFN(relu) + residual + LN.
# ----------------------------------------------------------------------------
def _encoder_kernel(n_heads, n_tokens,
                    x_ref, wqkv_ref, bqkv_ref, wo_ref, bo_ref,
                    w1_ref, b1_ref, w2_ref, b2_ref,
                    g1_ref, be1_ref, g2_ref, be2_ref,
                    o_ref, enc_sc):
    layer = pl.program_id(1)

    @pl.when(layer == 0)
    def _():
        enc_sc[...] = x_ref[...].astype(jnp.float32)

    bb, nv, d = enc_sc.shape
    n_h = n_heads
    dh = d // n_h
    scale = 1.0 / (dh ** 0.5)
    cdt = wqkv_ref.dtype                               # bf16 MXU operand dtype

    x2 = enc_sc[...].reshape(bb * nv, d)               # (bb*Nv, D), f32 residual

    # ---- fused QKV projection: one (bb*Nv, D) x (D, 3D) MXU matmul ----
    qkv = jnp.dot(x2.astype(cdt), wqkv_ref[...],
                  preferred_element_type=jnp.float32) + bqkv_ref[...]

    key_ok = None
    if nv != n_tokens:                                 # mask zero-pad tokens as keys
        key_ok = lax.broadcasted_iota(jnp.int32, (1, 1, nv), 2) < n_tokens

    # ---- per-head scores / context (inherently dh-wide contractions) ----
    ctx_heads = []
    for h in range(n_h):
        qh = qkv[:, h * dh:(h + 1) * dh].reshape(bb, nv, dh)
        kh = qkv[:, d + h * dh:d + (h + 1) * dh].reshape(bb, nv, dh)
        vh = qkv[:, 2 * d + h * dh:2 * d + (h + 1) * dh].reshape(bb, nv, dh)
        s = jnp.einsum('bqe,bke->bqk', qh.astype(cdt), kh.astype(cdt),
                       preferred_element_type=jnp.float32) * scale
        if key_ok is not None:
            s = jnp.where(key_ok, s, -1e30)
        s = s - jnp.max(s, axis=-1, keepdims=True)
        p = jnp.exp(s)
        a = p * pl.reciprocal(jnp.sum(p, axis=-1, keepdims=True), approx=True)
        ctx_heads.append(jnp.einsum('bqk,bke->bqe',
                                    a.astype(cdt), vh.astype(cdt),
                                    preferred_element_type=jnp.float32))
    ctx = jnp.concatenate(ctx_heads, axis=-1).reshape(bb * nv, d)

    # ---- single full-width output projection ----
    attn = jnp.dot(ctx.astype(cdt), wo_ref[...],
                   preferred_element_type=jnp.float32) + bo_ref[...]

    x1 = _layernorm(x2 + attn, g1_ref[...], be1_ref[...])

    # TODO(synk): for very large bb*Nv and d_ff, tile this FFN over row chunks
    # (lax.fori_loop) to bound the (rows, d_ff) f32 intermediate on v7x's 64 MiB.
    y = jnp.dot(x1.astype(cdt), w1_ref[...],
                preferred_element_type=jnp.float32) + b1_ref[...]
    y = jnp.maximum(y, 0.0)                                          # relu
    y = jnp.dot(y.astype(cdt), w2_ref[...],
                preferred_element_type=jnp.float32) + b2_ref[...]

    out = _layernorm(x1 + y, g2_ref[...], be2_ref[...])
    enc_sc[...] = out.reshape(bb, nv, d)

    @pl.when(layer == pl.num_programs(1) - 1)
    def _():
        o_ref[...] = enc_sc[...].astype(o_ref.dtype)


def encoder(x, sp, n_heads, n_tokens, bb, vmem_limit):
    B, nvp, D = x.shape
    e_layers = sp['wqkv'].shape[0]

    order = ('wqkv', 'bqkv', 'wo', 'bo', 'w1', 'b1', 'w2', 'b2',
             'g1', 'be1', 'g2', 'be2')
    weights = [sp[k] for k in order]

    def wspec(arr):   # stacked (e_layers, X, Y) weights streamed by the layer axis
        return pl.BlockSpec((None,) + arr.shape[1:], lambda b, l: (l, 0, 0))

    in_specs = [pl.BlockSpec((bb, nvp, D), lambda b, l: (b, 0, 0))]
    in_specs += [wspec(a) for a in weights]

    return pl.pallas_call(
        functools.partial(_encoder_kernel, n_heads, n_tokens),
        out_shape=jax.ShapeDtypeStruct((B, nvp, D), jnp.float32),
        grid=(B // bb, e_layers),
        in_specs=in_specs,
        out_specs=pl.BlockSpec((bb, nvp, D), lambda b, l: (b, 0, 0)),
        scratch_shapes=[pltpu.VMEM((bb, nvp, D), jnp.float32)],
        compiler_params=pltpu.CompilerParams(
            dimension_semantics=("parallel", "arbitrary"),
            vmem_limit_bytes=vmem_limit),
    )(x, *weights)


# ----------------------------------------------------------------------------
# Kernel 3: fused final LayerNorm + projector + de-normalization + Linear(N, 1).
# Only the first round_up(N,8) token rows are DMA'd; lin_w is zero-padded so
# mark/pad rows contribute nothing.  Output is lane-dense (bb, 1, P_pad).
#   out[b,p] = sum_n (std[b,n]*wl[n]) * proj(LN(enc))[b,n,p]
#              + (sum_n std[b,n]*wl[n]) * bp[p] + sum_n mean[b,n]*wl[n] + lb
# ----------------------------------------------------------------------------
def _head_kernel(enc_ref, mean_ref, std_ref, g_ref, b_ref,
                 wp_ref, bp_ref, wl_ref, bl_ref, o_ref):
    x = enc_ref[...].astype(jnp.float32)                 # (bb, N8, D)
    x = _layernorm(x, g_ref[...], b_ref[...])            # encoder's final LayerNorm
    wl = wl_ref[...]                                      # (N8, 1), zero beyond N
    coef = std_ref[...] * wl                              # (bb, N8, 1)
    z = jnp.sum(coef * x, axis=1)                         # (bb, D)
    cdt = wp_ref.dtype
    out = jnp.dot(z.astype(cdt), wp_ref[...],
                  preferred_element_type=jnp.float32)     # (bb, P_pad)
    csum = jnp.sum(coef, axis=1)                          # (bb, 1)
    const = jnp.sum(mean_ref[...] * wl, axis=1)           # (bb, 1)
    res = out + csum * bp_ref[...] + const + bl_ref[...]
    o_ref[...] = res.reshape(res.shape[0], 1, res.shape[1]).astype(o_ref.dtype)


def head(enc, means, stdev, g, b, wp, bp, wl, bl, n8, bb, vmem_limit):
    B, nvp, D = enc.shape
    P = wp.shape[1]
    return pl.pallas_call(
        _head_kernel,
        out_shape=jax.ShapeDtypeStruct((B, 1, P), jnp.float32),
        grid=(B // bb,),
        in_specs=[pl.BlockSpec((bb, n8, D), lambda i: (i, 0, 0)),
                  pl.BlockSpec((bb, n8, 1), lambda i: (i, 0, 0)),
                  pl.BlockSpec((bb, n8, 1), lambda i: (i, 0, 0)),
                  pl.BlockSpec((1, D), lambda i: (0, 0)),
                  pl.BlockSpec((1, D), lambda i: (0, 0)),
                  pl.BlockSpec((D, P), lambda i: (0, 0)),
                  pl.BlockSpec((1, P), lambda i: (0, 0)),
                  pl.BlockSpec((n8, 1), lambda i: (0, 0)),
                  pl.BlockSpec((1, 1), lambda i: (0, 0))],
        out_specs=pl.BlockSpec((bb, 1, P), lambda i: (i, 0, 0)),
        compiler_params=pltpu.CompilerParams(
            dimension_semantics=("parallel",), vmem_limit_bytes=vmem_limit),
    )(enc, means, stdev, g, b, wp, bp, wl, bl)


# ----------------------------------------------------------------------------
# Full forward pass
# ----------------------------------------------------------------------------
def itransformer_forward(params, x_enc, x_mark_enc, x_dec=None, x_mark_dec=None):
    B, L, N = x_enc.shape
    pred_len = params['pred_len']
    n_mark = 0 if x_mark_enc is None else x_mark_enc.shape[-1]
    n_tokens = N + n_mark
    nv_pad = _round_up(n_tokens, 8)

    # token-major layout (B, Nv_pad, L): variates first, time-marks next, zero pad
    parts = [jnp.swapaxes(x_enc.astype(jnp.float32), 1, 2)]
    if n_mark:
        parts.append(jnp.swapaxes(x_mark_enc.astype(jnp.float32), 1, 2))
    if nv_pad > n_tokens:
        parts.append(jnp.zeros((B, nv_pad - n_tokens, L), jnp.float32))
    x_tok = jnp.concatenate(parts, axis=1) if len(parts) > 1 else parts[0]

    stacked = params['stacked']
    D = params['emb_w'].shape[1]
    d_ff = stacked['w1'].shape[2]
    layer_w_bytes = sum(int(a.nbytes) // int(a.shape[0]) for a in stacked.values())

    vmem_cap = _vmem_capacity_bytes()
    vmem_limit = int(min(int(vmem_cap * 0.85), 100 * 1024 * 1024))
    bb = _pick_batch_block(B, nv_pad, L, D, d_ff, layer_w_bytes,
                           int(vmem_limit * 0.8),
                           min_steps=2 if _is_multicore_chip() else 1)

    enc, means, stdev = embed(x_tok, params['emb_w'], params['emb_b'], N, bb,
                              vmem_limit)
    enc = encoder(enc, stacked, params['n_heads'], n_tokens, bb, vmem_limit)

    n8 = params['lin_w'].shape[0]                     # round_up(d_feat, 8)
    assert n8 <= nv_pad
    out = head(enc, means, stdev, params['norm_g'], params['norm_b'],
               params['proj_w'], params['proj_b'],
               params['lin_w'], params['lin_b'], n8, bb, vmem_limit)  # (B,1,P_pad)

    p_pad = out.shape[-1]
    out = out.reshape(B, p_pad)[:, :pred_len, None]   # lane-pad slice, (B, P, 1)
    return out                                        # == dec_out[:, -pred_len:, :]


# ----------------------------------------------------------------------------
# Deterministic parameter init (shapes follow the module's __init__).
# Per-layer weights are stacked along a leading e_layers axis; Wq|Wk|Wv are
# pre-fused into (D, 3D); big matrices are stored in bf16 (f32 accumulation in
# kernel), statistics / LayerNorm / bias params stay f32.
# ----------------------------------------------------------------------------
def init_params(key, *, seq_len, pred_len, d_feat, d_model, n_heads, d_ff, e_layers):
    assert d_model % n_heads == 0
    keys = iter(jax.random.split(key, 8 + 4 * e_layers))

    def w(shape, scale=0.02):
        return jax.random.normal(next(keys), shape, jnp.float32) * scale

    wdt = jnp.bfloat16

    wqkv, wo, w1, w2 = [], [], [], []
    for _ in range(e_layers):
        wqkv.append(w((d_model, 3 * d_model)))
        wo.append(w((d_model, d_model)))
        w1.append(w((d_model, d_ff)))
        w2.append(w((d_ff, d_model)))

    def ez(*s):
        return jnp.zeros((e_layers,) + s, jnp.float32)

    def eo(*s):
        return jnp.ones((e_layers,) + s, jnp.float32)

    stacked = {
        'wqkv': jnp.stack(wqkv).astype(wdt), 'bqkv': ez(1, 3 * d_model),
        'wo': jnp.stack(wo).astype(wdt),     'bo': ez(1, d_model),
        'w1': jnp.stack(w1).astype(wdt),     'b1': ez(1, d_ff),
        'w2': jnp.stack(w2).astype(wdt),     'b2': ez(1, d_model),
        'g1': eo(1, d_model), 'be1': ez(1, d_model),
        'g2': eo(1, d_model), 'be2': ez(1, d_model),
    }

    # TODO(synk): for real configs also pad d_model / d_ff to multiples of 128
    # (lane) — requires masked LayerNorm statistics, so it is left to the caller.
    p_pad = _round_up(pred_len, 128)            # lane-dense projector / head output
    n8 = _round_up(d_feat, 8)                   # sublane-padded Linear(d_feat, 1)
    proj_w = jnp.zeros((d_model, p_pad), jnp.float32)
    proj_w = proj_w.at[:, :pred_len].set(w((d_model, pred_len)))
    lin_w = jnp.zeros((n8, 1), jnp.float32).at[:d_feat, :].set(w((d_feat, 1)))

    return {
        'n_heads': n_heads,
        'pred_len': pred_len,
        'emb_w': w((seq_len, d_model)).astype(wdt),
        'emb_b': jnp.zeros((1, d_model), jnp.float32),
        'norm_g': jnp.ones((1, d_model), jnp.float32),
        'norm_b': jnp.zeros((1, d_model), jnp.float32),
        'proj_w': proj_w.astype(wdt),
        'proj_b': jnp.zeros((1, p_pad), jnp.float32),
        'lin_w': lin_w,
        'lin_b': jnp.zeros((1, 1), jnp.float32),
        'stacked': stacked,
    }


if __name__ == "__main__":
    # small config
    B, L, N = 2, 16, 4          # batch, seq_len, variates (d_feat = N)
    n_mark = 4                  # time-mark features
    d_model, n_heads, d_ff = 32, 4, 64
    e_layers, pred_len = 2, 8

    key = jax.random.PRNGKey(0)
    k_x, k_m, k_d, k_md, k_p = jax.random.split(key, 5)
    x_enc = jax.random.normal(k_x, (B, L, N), jnp.float32)
    x_mark_enc = jax.random.normal(k_m, (B, L, n_mark), jnp.float32)
    x_dec = jax.random.normal(k_d, (B, pred_len, N), jnp.float32)           # unused
    x_mark_dec = jax.random.normal(k_md, (B, pred_len, n_mark), jnp.float32)  # unused

    params = init_params(k_p, seq_len=L, pred_len=pred_len, d_feat=N,
                         d_model=d_model, n_heads=n_heads, d_ff=d_ff,
                         e_layers=e_layers)

    # TODO(synk): dropout layers are identity at inference; no Pallas RNG needed.
    out = itransformer_forward(params, x_enc, x_mark_enc, x_dec, x_mark_dec)
    out = jax.block_until_ready(out)
    assert out.shape == (B, pred_len, 1), out.shape
    assert bool(jnp.all(jnp.isfinite(out)))
    print("KERNEL_OK")
</pallas_src>

<mosaic_0001>
module attributes {stable_mosaic.version = 11 : i64} {
  func.func @_embed_kernel(%arg0: i32, %arg1: memref<2x8x16xf32, #tpu.memory_space<vmem>>, %arg2: memref<16x32xbf16, #tpu.memory_space<vmem>>, %arg3: memref<1x32xf32, #tpu.memory_space<vmem>>, %arg4: memref<2x8x32xf32, #tpu.memory_space<vmem>>, %arg5: memref<2x8x1xf32, #tpu.memory_space<vmem>>, %arg6: memref<2x8x1xf32, #tpu.memory_space<vmem>>) attributes {dimension_semantics = [#tpu.dimension_semantics<parallel>], iteration_bounds = array<i64: 1>, scalar_prefetch = 0 : i64, scratch_operands = 0 : i64, tpu.core_type = #tpu.core_type<tc>, window_params = [{transform_indices = @transform_0, window_bounds = array<i64: 2, 8, 16>}, {pipeline_mode = #tpu.pipeline_mode<synchronous>, transform_indices = @transform_1, window_bounds = array<i64: 16, 32>}, {pipeline_mode = #tpu.pipeline_mode<synchronous>, transform_indices = @transform_2, window_bounds = array<i64: 1, 32>}, {transform_indices = @transform_3, window_bounds = array<i64: 2, 8, 32>}, {transform_indices = @transform_4, window_bounds = array<i64: 2, 8, 1>}, {transform_indices = @transform_5, window_bounds = array<i64: 2, 8, 1>}]} {
    %c0 = arith.constant 0 : index
    %c0_0 = arith.constant 0 : index
    %c0_1 = arith.constant 0 : index
    %0 = vector.load %arg1[%c0, %c0_0, %c0_1] : memref<2x8x16xf32, #tpu.memory_space<vmem>>, vector<2x8x16xf32>
    %cst = arith.constant dense<0.000000e+00> : vector<2x8xf32>
    %1 = vector.multi_reduction <add>, %0, %cst [2] : vector<2x8x16xf32> to vector<2x8xf32>
    %2 = vector.shape_cast %1 : vector<2x8xf32> to vector<2x8x1xf32>
    %cst_2 = arith.constant 1.600000e+01 : f32
    %3 = vector.broadcast %cst_2 : f32 to vector<2x8x1xf32>
    %4 = arith.divf %2, %3 : vector<2x8x1xf32>
    %5 = vector.broadcast %4 : vector<2x8x1xf32> to vector<2x8x16xf32>
    %6 = arith.subf %0, %5 : vector<2x8x16xf32>
    %7 = arith.mulf %6, %6 : vector<2x8x16xf32>
    %cst_3 = arith.constant dense<0.000000e+00> : vector<2x8xf32>
    %8 = vector.multi_reduction <add>, %7, %cst_3 [2] : vector<2x8x16xf32> to vector<2x8xf32>
    %9 = vector.shape_cast %8 : vector<2x8xf32> to vector<2x8x1xf32>
    %cst_4 = arith.constant 1.600000e+01 : f32
    %10 = vector.broadcast %cst_4 : f32 to vector<2x8x1xf32>
    %11 = arith.divf %9, %10 : vector<2x8x1xf32>
    %cst_5 = arith.constant 9.99999974E-6 : f32
    %12 = vector.broadcast %cst_5 : f32 to vector<2x8x1xf32>
    %13 = arith.addf %11, %12 : vector<2x8x1xf32>
    %14 = math.rsqrt %13 : vector<2x8x1xf32>
    %15 = tpu.iota {dimensions = array<i32: 1>} : vector<1x8x1xi32>
    %c4_i32 = arith.constant 4 : i32
    %16 = vector.broadcast %c4_i32 : i32 to vector<1x8x1xi32>
    %17 = arith.cmpi slt, %15, %16 : vector<1x8x1xi32>
    %18 = vector.broadcast %14 : vector<2x8x1xf32> to vector<2x8x16xf32>
    %19 = arith.mulf %6, %18 : vector<2x8x16xf32>
    %20 = vector.shape_cast %17 : vector<1x8x1xi1> to vector<1x8x1xi1>
    %21 = vector.broadcast %20 : vector<1x8x1xi1> to vector<2x8x16xi1>
    %22 = arith.select %21, %19, %0 : vector<2x8x16xi1>, vector<2x8x16xf32>
    %23 = vector.shape_cast %22 : vector<2x8x16xf32> to vector<16x16xf32>
    %24 = arith.truncf %23 : vector<16x16xf32> to vector<16x16xbf16>
    %c0_6 = arith.constant 0 : index
    %c0_7 = arith.constant 0 : index
    %25 = vector.load %arg2[%c0_6, %c0_7] : memref<16x32xbf16, #tpu.memory_space<vmem>>, vector<16x32xbf16>
    %cst_8 = arith.constant dense<0.000000e+00> : vector<16x32xf32>
    %26 = tpu.matmul %24, %25, %cst_8 {dimension_numbers = #tpu.dot_dimension_numbers<[1], [0], [0], [1], [0, 0, 1, 1], [], []>} : vector<16x16xbf16>, vector<16x32xbf16>, vector<16x32xf32> -> vector<16x32xf32>
    %c0_9 = arith.constant 0 : index
    %c0_10 = arith.constant 0 : index
    %27 = vector.load %arg3[%c0_9, %c0_10] : memref<1x32xf32, #tpu.memory_space<vmem>>, vector<1x32xf32>
    %28 = vector.broadcast %27 : vector<1x32xf32> to vector<16x32xf32>
    %29 = arith.addf %26, %28 : vector<16x32xf32>
    %30 = vector.shape_cast %29 : vector<16x32xf32> to vector<2x8x32xf32>
    %c0_11 = arith.constant 0 : index
    %c0_12 = arith.constant 0 : index
    %c0_13 = arith.constant 0 : index
    %31 = vector.load %arg4[%c0_11, %c0_12, %c0_13] : memref<2x8x32xf32, #tpu.memory_space<vmem>>, vector<2x8x32xf32>
    tpu.vector_store %arg4[%c0_11, %c0_12, %c0_13], %30 {strides = array<i32>} : memref<2x8x32xf32, #tpu.memory_space<vmem>>, vector<2x8x32xf32>,
    %c0_14 = arith.constant 0 : index
    %c0_15 = arith.constant 0 : index
    %c0_16 = arith.constant 0 : index
    %32 = vector.load %arg5[%c0_14, %c0_15, %c0_16] : memref<2x8x1xf32, #tpu.memory_space<vmem>>, vector<2x8x1xf32>
    tpu.vector_store %arg5[%c0_14, %c0_15, %c0_16], %4 {strides = array<i32>} : memref<2x8x1xf32, #tpu.memory_space<vmem>>, vector<2x8x1xf32>,
    %cst_17 = arith.constant 9.99999974E-6 : f32
    %33 = vector.broadcast %cst_17 : f32 to vector<2x8x1xf32>
    %34 = arith.addf %11, %33 : vector<2x8x1xf32>
    %35 = math.sqrt %34 : vector<2x8x1xf32>
    %c0_18 = arith.constant 0 : index
    %c0_19 = arith.constant 0 : index
    %c0_20 = arith.constant 0 : index
    %36 = vector.load %arg6[%c0_18, %c0_19, %c0_20] : memref<2x8x1xf32, #tpu.memory_space<vmem>>, vector<2x8x1xf32>
    tpu.vector_store %arg6[%c0_18, %c0_19, %c0_20], %35 {strides = array<i32>} : memref<2x8x1xf32, #tpu.memory_space<vmem>>, vector<2x8x1xf32>,
    return
  }
  func.func @transform_0(%arg0: i32) -> (i32, i32, i32) {
    %c0_i32 = arith.constant 0 : i32
    %c0_i32_0 = arith.constant 0 : i32
    %c0_i32_1 = arith.constant 0 : i32
    return %arg0, %c0_i32, %c0_i32_0 : i32, i32, i32
  }
  func.func @transform_1(%arg0: i32) -> (i32, i32) {
    %c0_i32 = arith.constant 0 : i32
    %c0_i32_0 = arith.constant 0 : i32
    %c0_i32_1 = arith.constant 0 : i32
    return %c0_i32, %c0_i32_0 : i32, i32
  }
  func.func @transform_2(%arg0: i32) -> (i32, i32) {
    %c0_i32 = arith.constant 0 : i32
    %c0_i32_0 = arith.constant 0 : i32
    %c0_i32_1 = arith.constant 0 : i32
    return %c0_i32, %c0_i32_0 : i32, i32
  }
  func.func @transform_3(%arg0: i32) -> (i32, i32, i32) {
    %c0_i32 = arith.constant 0 : i32
    %c0_i32_0 = arith.constant 0 : i32
    %c0_i32_1 = arith.constant 0 : i32
    return %arg0, %c0_i32, %c0_i32_0 : i32, i32, i32
  }
  func.func @transform_4(%arg0: i32) -> (i32, i32, i32) {
    %c0_i32 = arith.constant 0 : i32
    %c0_i32_0 = arith.constant 0 : i32
    %c0_i32_1 = arith.constant 0 : i32
    return %arg0, %c0_i32, %c0_i32_0 : i32, i32, i32
  }
  func.func @transform_5(%arg0: i32) -> (i32, i32, i32) {
    %c0_i32 = arith.constant 0 : i32
    %c0_i32_0 = arith.constant 0 : i32
    %c0_i32_1 = arith.constant 0 : i32
    return %arg0, %c0_i32, %c0_i32_0 : i32, i32, i32
  }
}

</mosaic_0001>

<llo_original>
// kernel: tpu_custom_call.1
$region0: #{tpu_custom_call.1}
  #allocation0 [shape = 'u32[]', space=smem, size = 0x4, offset = 0x4, fixed_abs, tag = 'smem constant byte address 0x4 - core index']
  #allocation1 [shape = 'u32[144,128]{1,0:T(1,128)}', space=vmem, size = 0x12000, scoped, tag = 'internal scratch']
  %s0 = inlined_call_operand.hbm [shape: f32[2,8,16], index: 0, kind: input, shape index: {}]
  %s1 = inlined_call_operand.hbm [shape: bf16[16,32], index: 1, kind: input, shape index: {}]
  %s2 = inlined_call_operand.vmem [shape: f32[1,32], index: 2, kind: input, shape index: {}]
  %s3 = inlined_call_operand.hbm [shape: f32[2,8,32], index: 3, kind: output, shape index: {0}]
  %s4 = inlined_call_operand.vmem [shape: f32[2,8,1], index: 4, kind: output, shape index: {1}]
  %s5 = inlined_call_operand.vmem [shape: f32[2,8,1], index: 5, kind: output, shape index: {2}]
  %6 = xla_tuple %s3, %s4, %s5
  %s7 = sld [smem:[#allocation0]]
  $region46: #{tpu_custom_call.1} parent=0
    _
  %s9 = ssub.s32 1, %s7
  %s10 = scalar_select 0, %s9, %s7
  $region1: #{tpu_custom_call.1} parent=0
    #allocation2 [shape = 'u8[8192]{0}', space=vmem, size = 0x2000, scoped, tag = 'input window, operand 0, single buffered']
    #allocation3 [shape = 's32[1]{0}', space=sflag, size = 0x4, scoped, tag = 'scoped memory for tpu_custom_call.1']
    #allocation4 [shape = 's32[1]{0}', space=sflag, size = 0x4, scoped, tag = 'scoped memory for tpu_custom_call.1']
    #allocation5 [shape = 'u8[4096]{0}', space=vmem, size = 0x1000, scoped, tag = 'input window, operand 1, single buffered']
    #allocation6 [shape = 's32[1]{0}', space=sflag, size = 0x4, scoped, tag = 'scoped memory for tpu_custom_call.1']
    #allocation7 [shape = 'u8[8192]{0}', space=vmem, size = 0x2000, scoped, tag = 'output window, operand 0, single buffered']
    %11 = vsyncpa [#allocation3], 0
    %12 = vsyncpa [#allocation6], 0
    %13 = vsyncpa [#allocation4], 0
    // Predicated region
    $region2: #{tpu_custom_call.1} parent=1 // pred_check
      _
    $region3: #{tpu_custom_call.1} parent=1 // pred_check_branch
      %15 = sbr.rel (0) target = $region5
    $region4: #{tpu_custom_call.1} parent=1 // pred_region
      %s17 = ssub.s32 256, 256
      %18 = vsyncadd [#allocation3], %s17
      %s19 = sshll.u32 [#allocation2], 4
      %s20 = int_to_ptr.vmem [resolvable:$true] %s19
      %25 = dma.hbm_to_vmem [thread:$0]  %s0, 256, %s20, [#allocation3], 128, 128, 8
    $region5: #{tpu_custom_call.1} parent=1 // pred_fallthru
      _
    // Predicated region
    $region6: #{tpu_custom_call.1} parent=1 // pred_check
      _
    $region7: #{tpu_custom_call.1} parent=1 // pred_check_branch
      %27 = sbr.rel (0) target = $region9
    $region8: #{tpu_custom_call.1} parent=1 // pred_region
      %s29 = ssub.s32 128, 128
      %30 = vsyncadd [#allocation6], %s29
      %s31 = sshll.u32 [#allocation5], 4
      %s32 = int_to_ptr.vmem [resolvable:$true] %s31
      %37 = dma.hbm_to_vmem [thread:$0]  %s1, 128, %s32, [#allocation6], 64, 64, 4
    $region9: #{tpu_custom_call.1} parent=1 // pred_fallthru
      _
    // Predicated region
    $region10: #{tpu_custom_call.1} parent=1 // pred_check
      _
    $region11: #{tpu_custom_call.1} parent=1 // pred_check_branch
      %39 = sbr.rel (0) target = $region13
    $region12: #{tpu_custom_call.1} parent=1 // pred_region
      _
    $region13: #{tpu_custom_call.1} parent=1 // pred_fallthru
      _
    // Predicated region
    $region14: #{tpu_custom_call.1} parent=1 // pred_check
      _
    $region15: #{tpu_custom_call.1} parent=1 // pred_check_branch
      %41 = sbr.rel (0) target = $region17
    $region16: #{tpu_custom_call.1} parent=1 // pred_region
      %42 = dma.done [#allocation3], 256
    $region17: #{tpu_custom_call.1} parent=1 // pred_fallthru
      _
    // Predicated region
    $region18: #{tpu_custom_call.1} parent=1 // pred_check
      _
    $region19: #{tpu_custom_call.1} parent=1 // pred_check_branch
      %44 = sbr.rel (0) target = $region21
    $region20: #{tpu_custom_call.1} parent=1 // pred_region
      %45 = dma.done [#allocation6], 128
    $region21: #{tpu_custom_call.1} parent=1 // pred_fallthru
      _
    %v47 = vld [vmem:[#allocation2] sm:$0xff]
    %v48 = vld [vmem:[#allocation2 + $0x8] sm:$0xff]
    %vm49 = vcmask 130048
    %v50 = vsel %vm49, %v47, 0.0
    %51 = vadd.xlane.f32.xlu0 %v50
    %v52 = vpop.xlane.xlu0 %51
    %v53 = vsel %vm49, %v48, 0.0
    %54 = vadd.xlane.f32.xlu0 %v53
    %v55 = vpop.xlane.xlu0 %54
    %v56 = vrcp.pop 16.0
    %v57 = vmul.f32 %v52, %v56
    %v58 = vmul.f32 %v55, %v56
    %v59 = vsub.f32 %v47, %v57
    %v60 = vsub.f32 %v48, %v58
    %v61 = vmul.f32 %v59, %v59
    %v62 = vmul.f32 %v60, %v60
    %v63 = vsel %vm49, %v61, 0.0
    %64 = vadd.xlane.f32.xlu0 %v63
    %v65 = vpop.xlane.xlu0 %64
    %v66 = vsel %vm49, %v62, 0.0
    %67 = vadd.xlane.f32.xlu0 %v66
    %v68 = vpop.xlane.xlu0 %67
    %v69 = vmul.f32 %v65, %v56
    %v70 = vmul.f32 %v68, %v56
    %v71 = vadd.f32 %v69, 1e-05
    %v72 = vadd.f32 %v70, 1e-05
    %v73 = vrsqrt.pop %v71
    %v74 = vrsqrt.pop %v72
    %v75 = vlaneseq
    %v76 = vshrl.u32 %v75, 7
    %vm77 = vcmp.lt.s32.totalorder %v76, 4
    %v78 = vmul.f32 %v59, %v73
    %v79 = vmul.f32 %v60, %v74
    %v80 = vsel %vm77, 1, 0
    %vm81 = vcmp.eq.s32.totalorder %v80, 1
    %v82 = vsel %vm81, %v78, %v47
    %v83 = vsel %vm81, %v79, %v48
    %v84 = vpack.c.bf16 %v83, %v82
    %v85 = vld [vmem:[#allocation5] sm:$0xf]
    %v86 = vld [vmem:[#allocation5 + $0x4] sm:$0xf]
    %v87 = vld [vmem:[%s2] sm:$0x1]
    %v89 = vlaneseq
    %v90 = vshrl.u32 %v89, 7
    %v91 = vsub.s32 0, %v90
    %v92 = vrot.slane %v87, %v91
    %v96 = vunpack.c.l.b16 %v85
    %v97 = vunpack.c.l.b16 %v86
    %v98 = vpack.c.b16 %v97, %v96
    %v101 = vsel %vm49, %v84, 0
    %103 = vmatprep.subr.bf16.mxu0 0
    %104 = vmatpush1.bf16.msra.mxu0 0
    %105 = vmatprep.subr.bf16.mxu0 0
    %106 = vmatpush1.bf16.msra.mxu0 0
    %107 = vmatprep.subr.bf16.mxu0 0
    %108 = vmatpush1.bf16.msra.mxu0 0
    %109 = vmatprep.subr.bf16.mxu0 0
    %110 = vmatpush1.bf16.msra.mxu0 0
    %111 = vmatprep.subr.bf16.mxu0 0
    %112 = vmatpush1.bf16.msra.mxu0 0
    %113 = vmatprep.subr.bf16.mxu0 0
    %114 = vmatpush1.bf16.msra.mxu0 0
    %115 = vmatprep.subr.bf16.mxu0 0
    %116 = vmatpush1.bf16.msra.mxu0 0
    %117 = vmatprep.subr.bf16.mxu0 0
    %118 = vmatpush1.bf16.msra.mxu0 %v98
    %119 = vmatprep.subr.bf16.mxu0 0
    %120 = vmatpush2.bf16.msra.mxu0 0
    %121 = vmatprep.subr.bf16.mxu0 0
    %122 = vmatpush2.bf16.msra.mxu0 0
    %123 = vmatprep.subr.bf16.mxu0 0
    %124 = vmatpush2.bf16.msra.mxu0 0
    %125 = vmatprep.subr.bf16.mxu0 0
    %126 = vmatpush2.bf16.msra.mxu0 0
    %127 = vmatprep.subr.bf16.mxu0 0
    %128 = vmatpush2.bf16.msra.mxu0 0
    %129 = vmatprep.subr.bf16.mxu0 0
    %130 = vmatpush2.bf16.msra.mxu0 0
    %131 = vmatprep.subr.bf16.mxu0 0
    %132 = vmatpush2.bf16.msra.mxu0 0
    %133 = vmatprep.subr.bf16.mxu0 0
    %134 = vmatpush2.bf16.msra.mxu0 0
    %135 = vmatprep.mubr.bf16.mxu0 0
    %136 = vmatmul.mubr.bf16.gmra.mxu0 %v101
    %v137 = vpop.f32.mrf.mxu0
    %v138 = vadd.f32 %v92, %v137
    %v139 = vpop.f32.mrf.mxu0
    %v140 = vpop.f32.mrf.mxu0
    %v141 = vadd.f32 %v92, %v140
    %v142 = vpop.f32.mrf.mxu0
    %143 = vdwg.mxu0
    %vm144 = vcmask 261120
    %145 = vst.msk [vmem:[#allocation7] sm:$0xff] %vm144, %v138
    %146 = vst.msk [vmem:[#allocation7 + $0x8] sm:$0xff] %vm144, %v141
    %vm147 = vcmask 7168
    %148 = vst.msk [vmem:[%s4] sm:$0xff] %vm147, %v57
    %149 = vst.msk [vmem:[%s4 + $0x8] sm:$0xff] %vm147, %v58
    %v150 = vrsqrt.pop %v71
    %v151 = vmul.f32 %v71, %v150
    %vm152 = vcmp.eq.f32.partialorder %v71, inf
    %v153 = vsel %vm152, %v71, %v151
    %vm154 = vcmp.eq.f32.partialorder %v71, 0.0
    %v155 = vand.u32 %v71, 2147483648
    %v156 = vsel %vm154, %v155, %v153
    %v157 = vrsqrt.pop %v72
    %v158 = vmul.f32 %v72, %v157
    %vm159 = vcmp.eq.f32.partialorder %v72, inf
    %v160 = vsel %vm159, %v72, %v158
    %vm161 = vcmp.eq.f32.partialorder %v72, 0.0
    %v162 = vand.u32 %v72, 2147483648
    %v163 = vsel %vm161, %v162, %v160
    %164 = vst.msk [vmem:[%s5] sm:$0xff] %vm147, %v156
    %165 = vst.msk [vmem:[%s5 + $0x8] sm:$0xff] %vm147, %v163
    // Predicated region
    $region22: #{tpu_custom_call.1} parent=1 // pred_check
      _
    $region23: #{tpu_custom_call.1} parent=1 // pred_check_branch
      %167 = sbr.rel (0) target = $region25
    $region24: #{tpu_custom_call.1} parent=1 // pred_region
      %s169 = ssub.s32 256, 256
      %170 = vsyncadd [#allocation4], %s169
      %s171 = sshll.u32 [#allocation7], 4
      %s172 = int_to_ptr.vmem [resolvable:$true] %s171
      %177 = dma.vmem_to_hbm [thread:$0]  %s172, 256, %s3, [#allocation4], 128, 128, 8
    $region25: #{tpu_custom_call.1} parent=1 // pred_fallthru
      _
    // Predicated region
    $region26: #{tpu_custom_call.1} parent=1 // pred_check
      _
    $region27: #{tpu_custom_call.1} parent=1 // pred_check_branch
      %179 = sbr.rel (0) target = $region29
    $region28: #{tpu_custom_call.1} parent=1 // pred_region
      _
    $region29: #{tpu_custom_call.1} parent=1 // pred_fallthru
      _
    // Predicated region
    $region30: #{tpu_custom_call.1} parent=1 // pred_check
      _
    $region31: #{tpu_custom_call.1} parent=1 // pred_check_branch
      %181 = sbr.rel (0) target = $region33
    $region32: #{tpu_custom_call.1} parent=1 // pred_region
      _
    $region33: #{tpu_custom_call.1} parent=1 // pred_fallthru
      _
    // Predicated region
    $region34: #{tpu_custom_call.1} parent=1 // pred_check
      _
    $region35: #{tpu_custom_call.1} parent=1 // pred_check_branch
      %183 = sbr.rel (0) target = $region37
    $region36: #{tpu_custom_call.1} parent=1 // pred_region
      %184 = dma.done [#allocation4], 256
    $region37: #{tpu_custom_call.1} parent=1 // pred_fallthru
      _
    // Predicated region
    $region38: #{tpu_custom_call.1} parent=1 // pred_check
      _
    $region39: #{tpu_custom_call.1} parent=1 // pred_check_branch
      %186 = sbr.rel (0) target = $region41
    $region40: #{tpu_custom_call.1} parent=1 // pred_region
      _
    $region41: #{tpu_custom_call.1} parent=1 // pred_fallthru
      _
    // Predicated region
    $region42: #{tpu_custom_call.1} parent=1 // pred_check
      _
    $region43: #{tpu_custom_call.1} parent=1 // pred_check_branch
      %188 = sbr.rel (0) target = $region45
    $region44: #{tpu_custom_call.1} parent=1 // pred_region
      _
    $region45: #{tpu_custom_call.1} parent=1 // pred_fallthru
      _
    %189 = vsyncpa [#allocation3], 1
    %190 = vsyncpa [#allocation6], 1
    %191 = vsyncpa [#allocation4], 1

</llo_original>
